<compile_context>
chip_gen: v7x
topology: tpu7x:2x2x1
jax: 0.10.0
libtpu: 0.0.40
codegen_flags: <defaults>
</compile_context>

<pallas_src>
import jax
import jax.numpy as jnp
from jax import lax
from jax.experimental import pallas as pl
from jax.experimental.pallas import tpu as pltpu


_LANE = 128      # TPU lane width
_K_CHUNK = 256   # contraction chunk (matches 256-wide MXU contraction, 128-mult)
_TN_MAX = 512    # max output-point tile (multiple of 128)


def _round_up(x, m):
    return (x + m - 1) // m * m


# ----------------------------------------------------------------------------
# Gather kernel: K-chunked one-hot MXU matmul.
#   idx_ref : (1, 1, TN)      int32 original-point indices for this output tile
#   x_ref   : (1, C, N_pad)   lane-dense point cloud for this batch (resident)
#   o_ref   : (1, C, TN)      gathered points, lane-dense
# out[c, i] = sum_j x[c, j] * (j == idx[i])  == x[c, idx[i]]   (exact)
# ----------------------------------------------------------------------------
def _gather_kernel(idx_ref, x_ref, o_ref):
    kc = _K_CHUNK
    n_pad = x_ref.shape[2]
    c = x_ref.shape[1]
    tn = o_ref.shape[2]
    nk = n_pad // kc                                   # static trip count

    idx = idx_ref[0]                                   # (1, tn) int32
    # Small loop-invariant iota (kc x tn); hoisted out of the K loop.
    col_ids = lax.broadcasted_iota(jnp.int32, (kc, tn), 0)

    def body(k, acc):
        k0 = pl.multiple_of(k * kc, kc)
        x_chunk = x_ref[0, :, pl.ds(k0, kc)]                        # (C, kc)
        onehot = (col_ids == (idx - k0)).astype(x_ref.dtype)        # (kc, tn)
        return acc + jnp.dot(x_chunk, onehot,
                             preferred_element_type=jnp.float32)

    acc = lax.fori_loop(0, nk, body,
                        jnp.zeros((c, tn), jnp.float32),
                        unroll=(nk <= 8))
    o_ref[0] = acc.astype(o_ref.dtype)


def _gather_vmem_limit(c, n_pad, tn, kc, itemsize):
    """Conservative scoped-VMEM request for one grid step (with headroom)."""
    sub = 8
    c_pad = _round_up(max(c, 1), sub)
    need = (
        c_pad * n_pad * itemsize * 2        # cloud block (double-buffered)
        + sub * tn * 4 * 2                  # index block (double-buffered)
        + c_pad * tn * itemsize * 2         # output block (double-buffered)
        + 2 * kc * tn * max(itemsize, 4)    # one-hot chunk (+ slack)
        + kc * tn * 4                       # int32 compare operands
        + c_pad * tn * 4                    # f32 accumulator
    )
    # >= 16 MiB covers v5e's low scoped default; cap well under v7x's 64 MiB
    # physical VMEM per TensorCore.
    return int(min(max(2 * need, 16 << 20), 48 << 20))


def _gather_points(cloud, idx, n_points):
    """out[b, i, :] = cloud[b, idx[b, i], :] via per-batch one-hot MXU matmuls."""
    B, N, C = cloud.shape
    n_pad = _round_up(N, _K_CHUNK)              # contraction dim, chunk-aligned
    p_pad = _round_up(n_points, _LANE)          # output points, lane-aligned
    tn = min(p_pad, _TN_MAX)                    # output-point tile (lanes)
    p_pad = _round_up(p_pad, tn)

    # (B, N, C) -> lane-dense (B, C, n_pad).  Zero padding along N is never
    # selected because all indices are < N.
    # TODO(synk): when the same cloud is sampled repeatedly, hoist this
    # transpose+pad out of the call; it is the only remaining full-cloud HBM pass.
    x_t = jnp.transpose(cloud, (0, 2, 1))
    x_t = jnp.pad(x_t, ((0, 0), (0, 0), (0, n_pad - N)))

    # Pad indices with 0 (a valid row); padded output columns are sliced off.
    idx_p = jnp.pad(idx.astype(jnp.int32), ((0, 0), (0, p_pad - n_points)))
    idx_p = idx_p.reshape(B, 1, p_pad)

    itemsize = jnp.dtype(cloud.dtype).itemsize
    vmem_limit = _gather_vmem_limit(C, n_pad, tn, _K_CHUNK, itemsize)

    out = pl.pallas_call(
        _gather_kernel,
        out_shape=jax.ShapeDtypeStruct((B, C, p_pad), cloud.dtype),
        grid=(B, p_pad // tn),
        in_specs=[
            pl.BlockSpec((1, 1, tn), lambda b, t: (b, 0, t)),     # indices
            pl.BlockSpec((1, C, n_pad), lambda b, t: (b, 0, 0)),  # cloud block
        ],
        out_specs=pl.BlockSpec((1, C, tn), lambda b, t: (b, 0, t)),
        compiler_params=pltpu.CompilerParams(
            dimension_semantics=("parallel", "parallel"),
            vmem_limit_bytes=vmem_limit),
    )(idx_p, x_t)

    # TODO(synk): for very large N (>~4K) where the one-hot path is far off the
    # HBM roofline, switch to a scalar-prefetched make_async_copy DMA gather
    # (O(n_points) traffic) instead of the in-VMEM matmul.

    # Output-side transpose acts only on the tiny (B, C, p_pad) result.
    return jnp.transpose(out, (0, 2, 1))[:, :n_points, :]


# ----------------------------------------------------------------------------
# Forward pass: mask / index computation in XLA, gather in Pallas.
# ----------------------------------------------------------------------------
def random_point_sampling(pred_cloud, key, n_points, partial_cloud=None):
    if partial_cloud is not None:
        pred_cloud = jnp.concatenate([partial_cloud, pred_cloud], axis=1)
    B, N, C = pred_cloud.shape

    # Non-zero mask, matching torch's .sum(2).ne(0) semantics exactly.
    # (A valid point summing to exactly 0 is dropped, as in the reference.)
    mask = jnp.sum(pred_cloud, axis=-1) != 0                 # (B, N)
    n_pts = jnp.sum(mask.astype(jnp.int32), axis=1)          # (B,)

    k_perm, k_rep = jax.random.split(key)

    # One random shuffle serves both branches: kept points get i.i.d. uniform
    # keys (dropped points +inf), so the ascending argsort places the kept
    # indices first in uniformly random order.
    u = jax.random.uniform(k_perm, (B, N))
    keys = jnp.where(mask, -u, jnp.inf)
    order = jnp.argsort(keys, axis=1).astype(jnp.int32)      # (B, N)

    # With replacement (n_pts < n_points): uniform draws into the kept prefix.
    # NOTE: a batch with zero non-zero points returns its point 0 (the torch
    # reference would raise here; we cannot raise data-dependently under jit).
    rep = jax.random.randint(
        k_rep, (B, n_points), 0, jnp.maximum(n_pts, 1)[:, None])
    idx_w = jnp.take_along_axis(order, rep, axis=1)          # (B, n_points)

    # Without replacement (n_pts >= n_points): first n_points of the shuffle.
    if n_points <= N:
        idx_wo = order[:, :n_points]
    else:
        idx_wo = idx_w   # never selected: n_pts <= N < n_points for every batch

    final_idx = jnp.where((n_pts < n_points)[:, None], idx_w, idx_wo)
    final_idx = final_idx.astype(jnp.int32)

    return _gather_points(pred_cloud, final_idx, n_points)   # (B, n_points, C)


random_point_sampling_jit = jax.jit(
    random_point_sampling, static_argnames=("n_points",)
)


if __name__ == "__main__":
    key = jax.random.PRNGKey(0)
    B, N, C = 2, 16, 3
    NP_PARTIAL = 8
    N_POINTS = 8

    k_pred, k_part, k_s1, k_s2 = jax.random.split(key, 4)
    pred_cloud = jax.random.normal(k_pred, (B, N, C), dtype=jnp.float32)
    # Batch 1 gets only 6 non-zero points -> exercises the with-replacement branch.
    pred_cloud = pred_cloud.at[1, 6:, :].set(0.0)
    partial_cloud = jax.random.normal(k_part, (B, NP_PARTIAL, C), dtype=jnp.float32)

    def points_are_members(out, cloud):
        # Every sampled point must exactly equal some point of the source cloud
        # (the one-hot matmul gather is exact).
        eq = jnp.all(out[:, :, None, :] == cloud[:, None, :, :], axis=-1)
        return bool(jnp.all(jnp.any(eq, axis=-1)))

    # 1) pred_cloud only (mixed with/without replacement across the batch)
    out1 = jax.block_until_ready(
        random_point_sampling_jit(pred_cloud, k_s1, N_POINTS)
    )
    assert out1.shape == (B, N_POINTS, C)
    assert bool(jnp.all(jnp.sum(out1, axis=-1) != 0.0))  # only non-zero points
    assert points_are_members(out1, pred_cloud)

    # 2) with a partial cloud (exercises the concat path)
    out2 = jax.block_until_ready(
        random_point_sampling_jit(pred_cloud, k_s2, N_POINTS, partial_cloud)
    )
    full_cloud = jnp.concatenate([partial_cloud, pred_cloud], axis=1)
    assert out2.shape == (B, N_POINTS, C)
    assert bool(jnp.all(jnp.sum(out2, axis=-1) != 0.0))
    assert points_are_members(out2, full_cloud)

    print("KERNEL_OK")
</pallas_src>

<mosaic_0001>
module attributes {stable_mosaic.version = 11 : i64} {
  func.func @_gather_kernel(%arg0: i32, %arg1: i32, %arg2: memref<1x1x128xi32, #tpu.memory_space<vmem>>, %arg3: memref<1x3x256xf32, #tpu.memory_space<vmem>>, %arg4: memref<1x3x128xf32, #tpu.memory_space<vmem>>) attributes {dimension_semantics = [#tpu.dimension_semantics<parallel>, #tpu.dimension_semantics<parallel>], iteration_bounds = array<i64: 2, 1>, scalar_prefetch = 0 : i64, scratch_operands = 0 : i64, tpu.core_type = #tpu.core_type<tc>, window_params = [{transform_indices = @transform_0, window_bounds = array<i64: 1, 1, 128>}, {transform_indices = @transform_1, window_bounds = array<i64: 1, 3, 256>}, {transform_indices = @transform_2, window_bounds = array<i64: 1, 3, 128>}]} {
    %c0 = arith.constant 0 : index
    %c0_0 = arith.constant 0 : index
    %c0_1 = arith.constant 0 : index
    %0 = vector.load %arg2[%c0, %c0_0, %c0_1] : memref<1x1x128xi32, #tpu.memory_space<vmem>>, vector<1x1x128xi32>
    %1 = vector.shape_cast %0 : vector<1x1x128xi32> to vector<1x128xi32>
    %2 = tpu.iota {dimensions = array<i32: 0>} : vector<256x128xi32>
    %cst = arith.constant 0.000000e+00 : f32
    %3 = vector.broadcast %cst : f32 to vector<3x128xf32>
    %c0_i32 = arith.constant 0 : i32
    %c256_i32 = arith.constant 256 : i32
    %4 = arith.muli %c0_i32, %c256_i32 : i32
    %5 = tpu.assume_multiple %4, 256 : i32
    %c0_2 = arith.constant 0 : index
    %c0_3 = arith.constant 0 : index
    %6 = arith.index_cast %5 : i32 to index
    %7 = vector.load %arg3[%c0_2, %c0_3, %6] : memref<1x3x256xf32, #tpu.memory_space<vmem>>, vector<1x3x256xf32>
    %8 = vector.shape_cast %7 : vector<1x3x256xf32> to vector<3x256xf32>
    %9 = vector.broadcast %5 : i32 to vector<1x128xi32>
    %10 = arith.subi %1, %9 : vector<1x128xi32>
    %11 = vector.broadcast %10 : vector<1x128xi32> to vector<256x128xi32>
    %12 = arith.cmpi eq, %2, %11 : vector<256x128xi32>
    %13 = arith.extui %12 : vector<256x128xi1> to vector<256x128xi32>
    %14 = arith.sitofp %13 : vector<256x128xi32> to vector<256x128xf32>
    %cst_4 = arith.constant dense<0.000000e+00> : vector<3x128xf32>
    %15 = tpu.matmul %8, %14, %cst_4 {dimension_numbers = #tpu.dot_dimension_numbers<[1], [0], [0], [1], [0, 0, 1, 1], [], []>} : vector<3x256xf32>, vector<256x128xf32>, vector<3x128xf32> -> vector<3x128xf32>
    %16 = arith.addf %3, %15 : vector<3x128xf32>
    %c1_i32 = arith.constant 1 : i32
    %c0_5 = arith.constant 0 : index
    %c0_6 = arith.constant 0 : index
    %c0_7 = arith.constant 0 : index
    %17 = vector.load %arg4[%c0_5, %c0_6, %c0_7] : memref<1x3x128xf32, #tpu.memory_space<vmem>>, vector<1x3x128xf32>
    %18 = vector.shape_cast %17 : vector<1x3x128xf32> to vector<3x128xf32>
    %19 = vector.shape_cast %16 : vector<3x128xf32> to vector<1x3x128xf32>
    tpu.vector_store %arg4[%c0_5, %c0_6, %c0_7], %19 {strides = array<i32>} : memref<1x3x128xf32, #tpu.memory_space<vmem>>, vector<1x3x128xf32>,
    return
  }
  func.func @transform_0(%arg0: i32, %arg1: i32) -> (i32, i32, i32) {
    %c0_i32 = arith.constant 0 : i32
    %c0_i32_0 = arith.constant 0 : i32
    return %arg0, %c0_i32, %arg1 : i32, i32, i32
  }
  func.func @transform_1(%arg0: i32, %arg1: i32) -> (i32, i32, i32) {
    %c0_i32 = arith.constant 0 : i32
    %c0_i32_0 = arith.constant 0 : i32
    %c0_i32_1 = arith.constant 0 : i32
    return %arg0, %c0_i32, %c0_i32_0 : i32, i32, i32
  }
  func.func @transform_2(%arg0: i32, %arg1: i32) -> (i32, i32, i32) {
    %c0_i32 = arith.constant 0 : i32
    %c0_i32_0 = arith.constant 0 : i32
    return %arg0, %c0_i32, %arg1 : i32, i32, i32
  }
}

</mosaic_0001>

<llo_original>
// kernel: random_point_sampling.1
$region0: #{random_point_sampling.1}
  #allocation0 [shape = 'u32[]', space=smem, size = 0x4, offset = 0x4, fixed_abs, tag = 'smem constant byte address 0x4 - core index']
  #allocation1 [shape = 'u32[144,128]{1,0:T(1,128)}', space=vmem, size = 0x12000, scoped, tag = 'internal scratch']
  %s0 = inlined_call_operand.vmem [shape: s32[2,1,128], index: 0, kind: input, shape index: {}]
  %s1 = inlined_call_operand.vmem [shape: f32[2,3,256], index: 1, kind: input, shape index: {}]
  %s2 = inlined_call_operand.vmem [shape: f32[2,3,128], index: 2, kind: output, shape index: {}]
  %s3 = sld [smem:[#allocation0]]
  $region41: #{random_point_sampling.1} parent=0
    _
  %s5 = ssub.s32 1, %s3
  %s6 = scalar_select 0, %s5, %s3
  loop: start=0, step=1, limit=4
  $region2: #{random_point_sampling.1} parent=0 // loop_pre_header
    _
  $region3: #{random_point_sampling.1} parent=0 // loop_header
    %s8 = sphi 0, %s12
    %p9 = scmp.ge.s32.totalorder %s8, 4
    %s15 = sphi 0, %s27
    %s16 = sphi 0, %s23
    %s17 = sphi 0, %s15
    %s18 = sphi 0, %s16
    %s19 = sphi 0, %s17
    %s20 = sphi 0, %s18
    %s32 = sphi 0, %s34
    %s35 = sphi 0, %s32
    %s36 = sphi 0, %s35
    %s52 = sphi 0, %s36
    %s58 = sphi 0, %s60
    %s61 = sphi 0, %s58
    %s62 = sphi 0, %s61
    %s78 = sphi 0, %s62
    %s86 = sphi 0, %s88
    %s89 = sphi 0, %s86
    %s90 = sphi 0, %s89
    %s106 = sphi 0, %s90
  $region4: #{random_point_sampling.1} parent=0 // loop_header_branch
    %11 = sbr.rel (%p9) target = $region8
  $region5: #{random_point_sampling.1} parent=0 // loop_body
    %s13 = ssub.s32 %s8, 1
    %s14 = ssub.s32 %s8, 2
    %s21 = sadd.s32 1, %s16
    %p22 = scmp.ge.s32.totalorder %s21, 1
    %s23 = scalar_select %p22, 0, %s21
    %s24 = sadd.s32 1, %s15
    %s25 = scalar_select %p22, %s24, %s15
    %p26 = scmp.ge.s32.totalorder %s25, 2
    %s27 = scalar_select %p26, 0, %s25
    %s28 = ssub.s32 %s15, %s27
    %s29 = ssub.s32 %s16, %s23
    %s30 = sor.u32 %s28, %s29
    %p31 = scmp.eq.s32.totalorder %s30, 0
    %s33 = sadd.s32 %s32, 1
    %s34 = scalar_select %p31, %s32, %s33
    %p37 = pneg %p31
    %p38 = scmp.eq.s32.totalorder %s8, 1
    %p39 = por %p37, %p38
    %p40 = scmp.ne.s32.totalorder %s32, %s35
    %p41 = scmp.eq.s32.totalorder %s8, 0
    %p42 = por %p40, %p41
    %p43 = scmp.ne.s32.totalorder %s32, %s35
    %p44 = scmp.eq.s32.totalorder %s13, 1
    %p45 = por %p43, %p44
    %p46 = scmp.ne.s32.totalorder %s35, %s36
    %p47 = scmp.eq.s32.totalorder %s13, 0
    %p48 = por %p46, %p47
    %p49 = scmp.ne.s32.totalorder %s35, %s36
    %p50 = scmp.eq.s32.totalorder %s14, 1
    %p51 = por %p49, %p50
    %p53 = scmp.ne.s32.totalorder %s36, %s52
    %p54 = scmp.eq.s32.totalorder %s14, 0
    %p55 = por %p53, %p54
    %s56 = ssub.s32 %s15, %s27
    %p57 = scmp.eq.s32.totalorder %s56, 0
    %s59 = sadd.s32 %s58, 1
    %s60 = scalar_select %p57, %s58, %s59
    %p63 = pneg %p57
    %p64 = scmp.eq.s32.totalorder %s8, 1
    %p65 = por %p63, %p64
    %p66 = scmp.ne.s32.totalorder %s58, %s61
    %p67 = scmp.eq.s32.totalorder %s8, 0
    %p68 = por %p66, %p67
    %p69 = scmp.ne.s32.totalorder %s58, %s61
    %p70 = scmp.eq.s32.totalorder %s13, 1
    %p71 = por %p69, %p70
    %p72 = scmp.ne.s32.totalorder %s61, %s62
    %p73 = scmp.eq.s32.totalorder %s13, 0
    %p74 = por %p72, %p73
    %p75 = scmp.ne.s32.totalorder %s61, %s62
    %p76 = scmp.eq.s32.totalorder %s14, 1
    %p77 = por %p75, %p76
    %p79 = scmp.ne.s32.totalorder %s62, %s78
    %p80 = scmp.eq.s32.totalorder %s14, 0
    %p81 = por %p79, %p80
    %s82 = ssub.s32 %s15, %s27
    %s83 = ssub.s32 %s16, %s23
    %s84 = sor.u32 %s82, %s83
    %p85 = scmp.eq.s32.totalorder %s84, 0
    %s87 = sadd.s32 %s86, 1
    %s88 = scalar_select %p85, %s86, %s87
    %p91 = pneg %p85
    %p92 = scmp.eq.s32.totalorder %s8, 1
    %p93 = por %p91, %p92
    %p94 = scmp.ne.s32.totalorder %s86, %s89
    %p95 = scmp.eq.s32.totalorder %s8, 0
    %p96 = por %p94, %p95
    %p97 = scmp.ne.s32.totalorder %s86, %s89
    %p98 = scmp.eq.s32.totalorder %s13, 1
    %p99 = por %p97, %p98
    %p100 = scmp.ne.s32.totalorder %s89, %s90
    %p101 = scmp.eq.s32.totalorder %s13, 0
    %p102 = por %p100, %p101
    %p103 = scmp.ne.s32.totalorder %s89, %s90
    %p104 = scmp.eq.s32.totalorder %s14, 1
    %p105 = por %p103, %p104
    %p107 = scmp.ne.s32.totalorder %s90, %s106
    %p108 = scmp.eq.s32.totalorder %s14, 0
    %p109 = por %p107, %p108
    %p110 = scmp.le.s32.totalorder 1, %s8
    %p111 = scmp.lt.s32.totalorder %s8, 3
    %p112 = pnand %p110, %p111
    %p113 = pneg %p112
    // Predicated region
    $region9: #{random_point_sampling.1} parent=5 // pred_check
      _
    $region10: #{random_point_sampling.1} parent=5 // pred_check_branch
      %115 = sbr.rel (%p112) target = $region12
    $region11: #{random_point_sampling.1} parent=5 // pred_region
      %s116 = ssub.s32 %s8, 1
    $region12: #{random_point_sampling.1} parent=5 // pred_fallthru
      _
    %p117 = scmp.lt.s32.totalorder %s8, 2
    // Predicated region
    $region13: #{random_point_sampling.1} parent=5 // pred_check
      %p118 = pneg %p117
    $region14: #{random_point_sampling.1} parent=5 // pred_check_branch
      %120 = sbr.rel (%p118) target = $region16
    $region15: #{random_point_sampling.1} parent=5 // pred_region
      // Predicated region
      $region17: #{random_point_sampling.1} parent=15 // pred_check
        %p121 = pneg %p42
      $region18: #{random_point_sampling.1} parent=15 // pred_check_branch
        %123 = sbr.rel (%p121) target = $region20
      $region19: #{random_point_sampling.1} parent=15 // pred_region
        %p124 = scmp.lt.s32.totalorder %s15, 1
        %s125 = scalar_select %p124, %s15, 1
        %p126 = scmp.lt.s32.totalorder %s16, 0
        %s127 = scalar_select %p126, %s16, 0
        %s128 = sadd.s32 %s127, %s125
        %s129 = scalar_lea.vmem %s0, %s128
      $region20: #{random_point_sampling.1} parent=15 // pred_fallthru
        _
      // Predicated region
      $region21: #{random_point_sampling.1} parent=15 // pred_check
        %p130 = pneg %p68
      $region22: #{random_point_sampling.1} parent=15 // pred_check_branch
        %132 = sbr.rel (%p130) target = $region24
      $region23: #{random_point_sampling.1} parent=15 // pred_region
        %p133 = scmp.lt.s32.totalorder %s15, 1
        %s134 = scalar_select %p133, %s15, 1
        %s135 = smul.addr %s134, 2
        %s136 = smul.addr %s135, 4
        %s137 = scalar_lea.vmem %s1, %s136
      $region24: #{random_point_sampling.1} parent=15 // pred_fallthru
        _
    $region16: #{random_point_sampling.1} parent=5 // pred_fallthru
      _
    %p138 = scmp.le.s32.totalorder 1, %s8
    %p139 = scmp.lt.s32.totalorder %s8, 3
    %p140 = pnand %p138, %p139
    %p141 = pneg %p140
    // Predicated region
    $region25: #{random_point_sampling.1} parent=5 // pred_check
      _
    $region26: #{random_point_sampling.1} parent=5 // pred_check_branch
      %143 = sbr.rel (%p140) target = $region28
    $region27: #{random_point_sampling.1} parent=5 // pred_region
      %s144 = ssub.s32 %s8, 1
      %p145 = scmp.lt.s32.totalorder %s17, 1
      %s146 = scalar_select %p145, %s17, 1
      %p147 = scmp.lt.s32.totalorder %s18, 0
      %s148 = scalar_select %p147, %s18, 0
      %s149 = sadd.s32 %s148, %s146
      %s150 = scalar_lea.vmem %s0, %s149
      %p151 = pneg %p48
      %p152 = pneg %p45
      %p153 = scmp.lt.s32.totalorder %s17, 1
      %s154 = scalar_select %p153, %s17, 1
      %s155 = smul.addr %s154, 2
      %s156 = smul.addr %s155, 4
      %s157 = scalar_lea.vmem %s1, %s156
      %p158 = pneg %p74
      %p159 = pneg %p71
      %p160 = pneg %p102
      %p161 = pneg %p99
      %p162 = scmp.lt.s32.totalorder %s17, 1
      %s163 = scalar_select %p162, %s17, 1
      %p164 = scmp.lt.s32.totalorder %s18, 0
      %s165 = scalar_select %p164, %s18, 0
      %s166 = sadd.s32 %s165, %s163
      %s167 = smul.addr %s166, 4
      %s168 = scalar_lea.vmem %s2, %s167
      %p169 = scmp.lt.s32.totalorder %s17, 1
      %s170 = scalar_select %p169, %s17, 1
      %p171 = scmp.lt.s32.totalorder %s18, 0
      %s172 = scalar_select %p171, %s18, 0
      %s173 = sadd.s32 %s172, %s170
      %s174 = scalar_lea.vmem %s0, %s173
      %p175 = scmp.lt.s32.totalorder %s17, 1
      %s176 = scalar_select %p175, %s17, 1
      %s177 = smul.addr %s176, 2
      %s178 = smul.addr %s177, 4
      %s179 = scalar_lea.vmem %s1, %s178
      %p180 = scmp.lt.s32.totalorder %s17, 1
      %s181 = scalar_select %p180, %s17, 1
      %p182 = scmp.lt.s32.totalorder %s18, 0
      %s183 = scalar_select %p182, %s18, 0
      %s184 = sadd.s32 %s183, %s181
      %s185 = smul.addr %s184, 4
      %s186 = scalar_lea.vmem %s2, %s185
      %v187 = vld [vmem:[%s174] sm:$0x1]
      %v188 = vlaneseq
      %v189 = vshrl.u32 %v188, 7
      %v190 = vadd.s32 %v189, 8
      %v191 = vadd.s32 %v189, 16
      %v192 = vadd.s32 %v189, 24
      %v193 = vadd.s32 %v189, 32
      %v194 = vadd.s32 %v189, 40
      %v195 = vadd.s32 %v189, 48
      %v196 = vadd.s32 %v189, 56
      %v197 = vadd.s32 %v189, 64
      %v198 = vadd.s32 %v189, 72
      %v199 = vadd.s32 %v189, 80
      %v200 = vadd.s32 %v189, 88
      %v201 = vadd.s32 %v189, 96
      %v202 = vadd.s32 %v189, 104
      %v203 = vadd.s32 %v189, 112
      %v204 = vadd.s32 %v189, 120
      %v205 = vadd.s32 %v189, 128
      %v206 = vadd.s32 %v189, 136
      %v207 = vadd.s32 %v189, 144
      %v208 = vadd.s32 %v189, 152
      %v209 = vadd.s32 %v189, 160
      %v210 = vadd.s32 %v189, 168
      %v211 = vadd.s32 %v189, 176
      %v212 = vadd.s32 %v189, 184
      %v213 = vadd.s32 %v189, 192
      %v214 = vadd.s32 %v189, 200
      %v215 = vadd.s32 %v189, 208
      %v216 = vadd.s32 %v189, 216
      %v217 = vadd.s32 %v189, 224
      %v218 = vadd.s32 %v189, 232
      %v219 = vadd.s32 %v189, 240
      %v220 = vadd.s32 %v189, 248
      %v221 = vld [vmem:[%s179] sm:$0x77]
      %v222 = vstv 0
      %v223 = vsub.s32 %v187, %v222
      %v224 = vlaneseq
      %v225 = vshrl.u32 %v224, 7
      %v226 = vsub.s32 0, %v225
      %v227 = vrot.slane %v223, %v226
      %vm228 = vcmp.eq.s32.totalorder %v189, %v227
      %vm229 = vcmp.eq.s32.totalorder %v190, %v227
      %vm230 = vcmp.eq.s32.totalorder %v191, %v227
      %vm231 = vcmp.eq.s32.totalorder %v192, %v227
      %vm232 = vcmp.eq.s32.totalorder %v193, %v227
      %vm233 = vcmp.eq.s32.totalorder %v194, %v227
      %vm234 = vcmp.eq.s32.totalorder %v195, %v227
      %vm235 = vcmp.eq.s32.totalorder %v196, %v227
      %vm236 = vcmp.eq.s32.totalorder %v197, %v227
      %vm237 = vcmp.eq.s32.totalorder %v198, %v227
      %vm238 = vcmp.eq.s32.totalorder %v199, %v227
      %vm239 = vcmp.eq.s32.totalorder %v200, %v227
      %vm240 = vcmp.eq.s32.totalorder %v201, %v227
      %vm241 = vcmp.eq.s32.totalorder %v202, %v227
      %vm242 = vcmp.eq.s32.totalorder %v203, %v227
      %vm243 = vcmp.eq.s32.totalorder %v204, %v227
      %vm244 = vcmp.eq.s32.totalorder %v205, %v227
      %vm245 = vcmp.eq.s32.totalorder %v206, %v227
      %vm246 = vcmp.eq.s32.totalorder %v207, %v227
      %vm247 = vcmp.eq.s32.totalorder %v208, %v227
      %vm248 = vcmp.eq.s32.totalorder %v209, %v227
      %vm249 = vcmp.eq.s32.totalorder %v210, %v227
      %vm250 = vcmp.eq.s32.totalorder %v211, %v227
      %vm251 = vcmp.eq.s32.totalorder %v212, %v227
      %vm252 = vcmp.eq.s32.totalorder %v213, %v227
      %vm253 = vcmp.eq.s32.totalorder %v214, %v227
      %vm254 = vcmp.eq.s32.totalorder %v215, %v227
      %vm255 = vcmp.eq.s32.totalorder %v216, %v227
      %vm256 = vcmp.eq.s32.totalorder %v217, %v227
      %vm257 = vcmp.eq.s32.totalorder %v218, %v227
      %vm258 = vcmp.eq.s32.totalorder %v219, %v227
      %vm259 = vcmp.eq.s32.totalorder %v220, %v227
      %v260 = vsel %vm228, 1, 0
      %v261 = vsel %vm229, 1, 0
      %v262 = vsel %vm230, 1, 0
      %v263 = vsel %vm231, 1, 0
      %v264 = vsel %vm232, 1, 0
      %v265 = vsel %vm233, 1, 0
      %v266 = vsel %vm234, 1, 0
      %v267 = vsel %vm235, 1, 0
      %v268 = vsel %vm236, 1, 0
      %v269 = vsel %vm237, 1, 0
      %v270 = vsel %vm238, 1, 0
      %v271 = vsel %vm239, 1, 0
      %v272 = vsel %vm240, 1, 0
      %v273 = vsel %vm241, 1, 0
      %v274 = vsel %vm242, 1, 0
      %v275 = vsel %vm243, 1, 0
      %v276 = vsel %vm244, 1, 0
      %v277 = vsel %vm245, 1, 0
      %v278 = vsel %vm246, 1, 0
      %v279 = vsel %vm247, 1, 0
      %v280 = vsel %vm248, 1, 0
      %v281 = vsel %vm249, 1, 0
      %v282 = vsel %vm250, 1, 0
      %v283 = vsel %vm251, 1, 0
      %v284 = vsel %vm252, 1, 0
      %v285 = vsel %vm253, 1, 0
      %v286 = vsel %vm254, 1, 0
      %v287 = vsel %vm255, 1, 0
      %v288 = vsel %vm256, 1, 0
      %v289 = vsel %vm257, 1, 0
      %v290 = vsel %vm258, 1, 0
      %v291 = vsel %vm259, 1, 0
      %v292 = vcvt.s32.f32 %v260
      %v293 = vcvt.s32.f32 %v261
      %v294 = vcvt.s32.f32 %v262
      %v295 = vcvt.s32.f32 %v263
      %v296 = vcvt.s32.f32 %v264
      %v297 = vcvt.s32.f32 %v265
      %v298 = vcvt.s32.f32 %v266
      %v299 = vcvt.s32.f32 %v267
      %v300 = vcvt.s32.f32 %v268
      %v301 = vcvt.s32.f32 %v269
      %v302 = vcvt.s32.f32 %v270
      %v303 = vcvt.s32.f32 %v271
      %v304 = vcvt.s32.f32 %v272
      %v305 = vcvt.s32.f32 %v273
      %v306 = vcvt.s32.f32 %v274
      %v307 = vcvt.s32.f32 %v275
      %v308 = vcvt.s32.f32 %v276
      %v309 = vcvt.s32.f32 %v277
      %v310 = vcvt.s32.f32 %v278
      %v311 = vcvt.s32.f32 %v279
      %v312 = vcvt.s32.f32 %v280
      %v313 = vcvt.s32.f32 %v281
      %v314 = vcvt.s32.f32 %v282
      %v315 = vcvt.s32.f32 %v283
      %v316 = vcvt.s32.f32 %v284
      %v317 = vcvt.s32.f32 %v285
      %v318 = vcvt.s32.f32 %v286
      %v319 = vcvt.s32.f32 %v287
      %v320 = vcvt.s32.f32 %v288
      %v321 = vcvt.s32.f32 %v289
      %v322 = vcvt.s32.f32 %v290
      %v323 = vcvt.s32.f32 %v291
      %v325 = vcombine.high %v221, %v221
      %327 = vmatprep.subr.mxu0 0.0
      %328 = vmatpush1.msra.mxu0 %v292
      %329 = vmatprep.subr.mxu0 0.0
      %330 = vmatpush1.msra.mxu0 %v293
      %331 = vmatprep.subr.mxu0 0.0
      %332 = vmatpush1.msra.mxu0 %v294
      %333 = vmatprep.subr.mxu0 0.0
      %334 = vmatpush1.msra.mxu0 %v295
      %335 = vmatprep.subr.mxu0 0.0
      %336 = vmatpush1.msra.mxu0 %v296
      %337 = vmatprep.subr.mxu0 0.0
      %338 = vmatpush1.msra.mxu0 %v297
      %339 = vmatprep.subr.mxu0 0.0
      %340 = vmatpush1.msra.mxu0 %v298
      %341 = vmatprep.subr.mxu0 0.0
      %342 = vmatpush1.msra.mxu0 %v299
      %343 = vmatprep.subr.mxu0 0.0
      %344 = vmatpush1.msra.mxu0 %v300
      %345 = vmatprep.subr.mxu0 0.0
      %346 = vmatpush1.msra.mxu0 %v301
      %347 = vmatprep.subr.mxu0 0.0
      %348 = vmatpush1.msra.mxu0 %v302
      %349 = vmatprep.subr.mxu0 0.0
      %350 = vmatpush1.msra.mxu0 %v303
      %351 = vmatprep.subr.mxu0 0.0
      %352 = vmatpush1.msra.mxu0 %v304
      %353 = vmatprep.subr.mxu0 0.0
      %354 = vmatpush1.msra.mxu0 %v305
      %355 = vmatprep.subr.mxu0 0.0
      %356 = vmatpush1.msra.mxu0 %v306
      %357 = vmatprep.subr.mxu0 0.0
      %358 = vmatpush1.msra.mxu0 %v307
      %359 = vmatprep.subr.mxu0 0.0
      %360 = vmatpush1.msra.mxu0 %v308
      %361 = vmatprep.subr.mxu0 0.0
      %362 = vmatpush1.msra.mxu0 %v309
      %363 = vmatprep.subr.mxu0 0.0
      %364 = vmatpush1.msra.mxu0 %v310
      %365 = vmatprep.subr.mxu0 0.0
      %366 = vmatpush1.msra.mxu0 %v311
      %367 = vmatprep.subr.mxu0 0.0
      %368 = vmatpush1.msra.mxu0 %v312
      %369 = vmatprep.subr.mxu0 0.0
      %370 = vmatpush1.msra.mxu0 %v313
      %371 = vmatprep.subr.mxu0 0.0
      %372 = vmatpush1.msra.mxu0 %v314
      %373 = vmatprep.subr.mxu0 0.0
      %374 = vmatpush1.msra.mxu0 %v315
      %375 = vmatprep.subr.mxu0 0.0
      %376 = vmatpush1.msra.mxu0 %v316
      %377 = vmatprep.subr.mxu0 0.0
      %378 = vmatpush1.msra.mxu0 %v317
      %379 = vmatprep.subr.mxu0 0.0
      %380 = vmatpush1.msra.mxu0 %v318
      %381 = vmatprep.subr.mxu0 0.0
      %382 = vmatpush1.msra.mxu0 %v319
      %383 = vmatprep.subr.mxu0 0.0
      %384 = vmatpush1.msra.mxu0 %v320
      %385 = vmatprep.subr.mxu0 0.0
      %386 = vmatpush1.msra.mxu0 %v321
      %387 = vmatprep.subr.mxu0 0.0
      %388 = vmatpush1.msra.mxu0 %v322
      %389 = vmatprep.subr.mxu0 0.0
      %390 = vmatpush1.msra.mxu0 %v323
      %391 = vmatprep.mubr.f32.mxu0 %v325
      %392 = vmatmul.mubr.f32.gmra.mrb[0].mxu0 %v221
      %v393 = vpop.f32.mrb[0].mxu0
      %v394 = vadd.f32 0.0, %v393
      %v395 = vpop.f32.mrb[0].mxu0
      %396 = vdwg.mxu0
      %397 = vst [vmem:[%s186] sm:$0x7] %v394
      %p398 = scmp.lt.s32.totalorder %s17, 1
      %s399 = scalar_select %p398, %s17, 1
      %p400 = scmp.lt.s32.totalorder %s18, 0
      %s401 = scalar_select %p400, %s18, 0
      %s402 = sadd.s32 %s401, %s399
      %s403 = smul.addr %s402, 4
      %s404 = scalar_lea.vmem %s2, %s403
      // Predicated region
      $region29: #{random_point_sampling.1} parent=27 // pred_check
        %p405 = pneg %p99
      $region30: #{random_point_sampling.1} parent=27 // pred_check_branch
        %407 = sbr.rel (%p405) target = $region32
      $region31: #{random_point_sampling.1} parent=27 // pred_region
        _
      $region32: #{random_point_sampling.1} parent=27 // pred_fallthru
        _
    $region28: #{random_point_sampling.1} parent=5 // pred_fallthru
      _
    %p408 = scmp.le.s32.totalorder 2, %s8
    // Predicated region
    $region33: #{random_point_sampling.1} parent=5 // pred_check
      %p409 = pneg %p408
    $region34: #{random_point_sampling.1} parent=5 // pred_check_branch
      %411 = sbr.rel (%p409) target = $region36
    $region35: #{random_point_sampling.1} parent=5 // pred_region
      %s412 = ssub.s32 %s8, 2
      // Predicated region
      $region37: #{random_point_sampling.1} parent=35 // pred_check
        %p413 = pneg %p105
      $region38: #{random_point_sampling.1} parent=35 // pred_check_branch
        %415 = sbr.rel (%p413) target = $region40
      $region39: #{random_point_sampling.1} parent=35 // pred_region
        %p416 = scmp.lt.s32.totalorder %s19, 1
        %s417 = scalar_select %p416, %s19, 1
        %p418 = scmp.lt.s32.totalorder %s20, 0
        %s419 = scalar_select %p418, %s20, 0
        %s420 = sadd.s32 %s419, %s417
        %s421 = smul.addr %s420, 4
        %s422 = scalar_lea.vmem %s2, %s421
      $region40: #{random_point_sampling.1} parent=35 // pred_fallthru
        _
    $region36: #{random_point_sampling.1} parent=5 // pred_fallthru
      _
  $region6: #{random_point_sampling.1} parent=0 // loop_footer
    %s12 = sadd.s32 1, %s8
  $region7: #{random_point_sampling.1} parent=0 // loop_footer_branch
    %7 = sbr.rel target = $region3
  $region8: #{random_point_sampling.1} parent=0 // loop_exit
    _

</llo_original>
